<compile_context>
chip_gen: v7x
topology: tpu7x:2x2x1
jax: 0.10.0
libtpu: 0.0.40
codegen_flags: <defaults>
</compile_context>

<pallas_src>
import functools

import jax
import jax.numpy as jnp
from jax.experimental import pallas as pl
from jax.experimental.pallas import tpu as pltpu


def _layernorm_kernel(x_ref, w_ref, b_ref, o_ref, *, eps):
    x = x_ref[...].astype(jnp.float32)             # (tile_rows, H)
    u = jnp.mean(x, axis=-1, keepdims=True)        # row mean
    xc = x - u
    s = jnp.mean(xc * xc, axis=-1, keepdims=True)  # biased variance (matches .pow(2).mean)
    inv = jax.lax.rsqrt(s + eps)                   # eps inside sqrt (TF/BERT style)
    w = w_ref[...].astype(jnp.float32)             # (1, H), resident across steps
    b = b_ref[...].astype(jnp.float32)             # (1, H)
    # single wide lane-dense tile store
    o_ref[...] = (xc * inv * w + b).astype(o_ref.dtype)


def _sublane_multiple(dtype):
    # 8 for 4-byte dtypes, 16 for 2-byte (bf16/fp16), 32 for 1-byte.
    return max(8, 32 // jnp.dtype(dtype).itemsize)


def bert_layer_norm(x, weight, bias, eps=1e-12, row_tile=512):
    """x: (..., H). weight, bias: (H,). Returns same shape/dtype as x."""
    orig_shape = x.shape
    H = orig_shape[-1]
    x2 = x.reshape(-1, H)
    R = x2.shape[0]

    sub = _sublane_multiple(x2.dtype)
    if R <= row_tile:
        # Block equals the full row extent -> always a legal layout, single step.
        tile_rows = R
    else:
        # Keep the tile a multiple of the sublane packing factor.
        tile_rows = max(sub, (row_tile // sub) * sub)
    grid_rows = pl.cdiv(R, tile_rows)  # ragged last block handled by Pallas (OOB writes dropped)

    w2 = weight.reshape(1, H)
    b2 = bias.reshape(1, H)

    out = pl.pallas_call(
        functools.partial(_layernorm_kernel, eps=eps),
        out_shape=jax.ShapeDtypeStruct((R, H), x2.dtype),
        grid_spec=pltpu.PrefetchScalarGridSpec(
            num_scalar_prefetch=0,
            grid=(grid_rows,),
            in_specs=[
                pl.BlockSpec((tile_rows, H), lambda i: (i, 0)),
                pl.BlockSpec((1, H), lambda i: (0, 0)),   # weight: resident, one DMA total
                pl.BlockSpec((1, H), lambda i: (0, 0)),   # bias:   resident, one DMA total
            ],
            out_specs=pl.BlockSpec((tile_rows, H), lambda i: (i, 0)),
        ),
        compiler_params=pltpu.CompilerParams(
            dimension_semantics=("parallel",),
            vmem_limit_bytes=32 * 1024 * 1024,
        ),
    )(x2, w2, b2)

    return out.reshape(orig_shape)


def _reference(x, weight, bias, eps=1e-12):
    u = jnp.mean(x, axis=-1, keepdims=True)
    s = jnp.mean((x - u) ** 2, axis=-1, keepdims=True)
    xn = (x - u) / jnp.sqrt(s + eps)
    return weight * xn + bias


# TODO(synk): only BertLayerNorm of Roberta_seven is implemented as a Pallas
# kernel; RobertaModel, GRU/BiGRU, GatedTransformer, Conv1d projections,
# dropout and the classifier head have no clean single-kernel Pallas mapping
# here and are out of scope for this kernel.


if __name__ == "__main__":
    key = jax.random.PRNGKey(0)

    # Shapes consistent with the module: hidden_size=768 (lane-dense, 6*128),
    # small batch/seq for the demo.
    B, S, H = 2, 8, 768
    x = jax.random.normal(key, (B, S, H), dtype=jnp.float32)

    # deterministic parameter init matching nn.Parameter(ones/zeros)
    weight = jnp.ones((H,), dtype=jnp.float32)
    bias = jnp.zeros((H,), dtype=jnp.float32)

    y = bert_layer_norm(x, weight, bias, eps=1e-12)
    y = jax.block_until_ready(y)
    y_ref = _reference(x, weight, bias)
    assert y.shape == x.shape and y.dtype == x.dtype
    assert jnp.allclose(y, y_ref, atol=1e-5, rtol=1e-5), "mismatch vs reference"

    # Ragged-grid path: rows (B*S = 15) not a multiple of the tile -> last block
    # is out-of-bounds-masked by Pallas (no host-side pad / slice).
    x_r = jax.random.normal(jax.random.PRNGKey(1), (3, 5, H), dtype=jnp.float32)
    y_r = bert_layer_norm(x_r, weight, bias, eps=1e-12, row_tile=8)
    y_r = jax.block_until_ready(y_r)
    y_r_ref = _reference(x_r, weight, bias)
    assert y_r.shape == x_r.shape and y_r.dtype == x_r.dtype
    assert jnp.allclose(y_r, y_r_ref, atol=1e-5, rtol=1e-5), "ragged-grid mismatch vs reference"

    print("KERNEL_OK")
</pallas_src>

<mosaic_0001>
module attributes {stable_mosaic.version = 11 : i64} {
  func.func @_layernorm_kernel(%arg0: i32, %arg1: memref<16x768xf32, #tpu.memory_space<vmem>>, %arg2: memref<1x768xf32, #tpu.memory_space<vmem>>, %arg3: memref<1x768xf32, #tpu.memory_space<vmem>>, %arg4: memref<16x768xf32, #tpu.memory_space<vmem>>) attributes {dimension_semantics = [#tpu.dimension_semantics<parallel>], iteration_bounds = array<i64: 1>, scalar_prefetch = 0 : i64, scratch_operands = 0 : i64, tpu.core_type = #tpu.core_type<tc>, window_params = [{transform_indices = @transform_0, window_bounds = array<i64: 16, 768>}, {pipeline_mode = #tpu.pipeline_mode<synchronous>, transform_indices = @transform_1, window_bounds = array<i64: 1, 768>}, {pipeline_mode = #tpu.pipeline_mode<synchronous>, transform_indices = @transform_2, window_bounds = array<i64: 1, 768>}, {transform_indices = @transform_3, window_bounds = array<i64: 16, 768>}]} {
    %c0 = arith.constant 0 : index
    %c0_0 = arith.constant 0 : index
    %0 = vector.load %arg1[%c0, %c0_0] : memref<16x768xf32, #tpu.memory_space<vmem>>, vector<16x768xf32>
    %cst = arith.constant dense<0.000000e+00> : vector<16xf32>
    %1 = vector.multi_reduction <add>, %0, %cst [1] : vector<16x768xf32> to vector<16xf32>
    %2 = vector.shape_cast %1 : vector<16xf32> to vector<16x1xf32>
    %cst_1 = arith.constant 7.680000e+02 : f32
    %3 = vector.broadcast %cst_1 : f32 to vector<16x1xf32>
    %4 = arith.divf %2, %3 : vector<16x1xf32>
    %5 = vector.broadcast %4 : vector<16x1xf32> to vector<16x768xf32>
    %6 = arith.subf %0, %5 : vector<16x768xf32>
    %7 = arith.mulf %6, %6 : vector<16x768xf32>
    %cst_2 = arith.constant dense<0.000000e+00> : vector<16xf32>
    %8 = vector.multi_reduction <add>, %7, %cst_2 [1] : vector<16x768xf32> to vector<16xf32>
    %9 = vector.shape_cast %8 : vector<16xf32> to vector<16x1xf32>
    %cst_3 = arith.constant 7.680000e+02 : f32
    %10 = vector.broadcast %cst_3 : f32 to vector<16x1xf32>
    %11 = arith.divf %9, %10 : vector<16x1xf32>
    %cst_4 = arith.constant 9.99999996E-13 : f32
    %12 = vector.broadcast %cst_4 : f32 to vector<16x1xf32>
    %13 = arith.addf %11, %12 : vector<16x1xf32>
    %14 = math.rsqrt %13 : vector<16x1xf32>
    %c0_5 = arith.constant 0 : index
    %c0_6 = arith.constant 0 : index
    %15 = vector.load %arg2[%c0_5, %c0_6] : memref<1x768xf32, #tpu.memory_space<vmem>>, vector<1x768xf32>
    %c0_7 = arith.constant 0 : index
    %c0_8 = arith.constant 0 : index
    %16 = vector.load %arg3[%c0_7, %c0_8] : memref<1x768xf32, #tpu.memory_space<vmem>>, vector<1x768xf32>
    %17 = vector.broadcast %14 : vector<16x1xf32> to vector<16x768xf32>
    %18 = arith.mulf %6, %17 : vector<16x768xf32>
    %19 = vector.broadcast %15 : vector<1x768xf32> to vector<16x768xf32>
    %20 = arith.mulf %18, %19 : vector<16x768xf32>
    %21 = vector.broadcast %16 : vector<1x768xf32> to vector<16x768xf32>
    %22 = arith.addf %20, %21 : vector<16x768xf32>
    %c0_9 = arith.constant 0 : index
    %c0_10 = arith.constant 0 : index
    %23 = vector.load %arg4[%c0_9, %c0_10] : memref<16x768xf32, #tpu.memory_space<vmem>>, vector<16x768xf32>
    tpu.vector_store %arg4[%c0_9, %c0_10], %22 {strides = array<i32>} : memref<16x768xf32, #tpu.memory_space<vmem>>, vector<16x768xf32>,
    return
  }
  func.func @transform_0(%arg0: i32) -> (i32, i32) {
    %c0_i32 = arith.constant 0 : i32
    %c0_i32_0 = arith.constant 0 : i32
    return %arg0, %c0_i32 : i32, i32
  }
  func.func @transform_1(%arg0: i32) -> (i32, i32) {
    %c0_i32 = arith.constant 0 : i32
    %c0_i32_0 = arith.constant 0 : i32
    %c0_i32_1 = arith.constant 0 : i32
    return %c0_i32, %c0_i32_0 : i32, i32
  }
  func.func @transform_2(%arg0: i32) -> (i32, i32) {
    %c0_i32 = arith.constant 0 : i32
    %c0_i32_0 = arith.constant 0 : i32
    %c0_i32_1 = arith.constant 0 : i32
    return %c0_i32, %c0_i32_0 : i32, i32
  }
  func.func @transform_3(%arg0: i32) -> (i32, i32) {
    %c0_i32 = arith.constant 0 : i32
    %c0_i32_0 = arith.constant 0 : i32
    return %arg0, %c0_i32 : i32, i32
  }
}

</mosaic_0001>

<llo_original>
// kernel: tpu_custom_call.1
$region0: #{tpu_custom_call.1}
  #allocation0 [shape = 'u32[]', space=smem, size = 0x4, offset = 0x4, fixed_abs, tag = 'smem constant byte address 0x4 - core index']
  #allocation1 [shape = 'u32[144,128]{1,0:T(1,128)}', space=vmem, size = 0x12000, scoped, tag = 'internal scratch']
  %s0 = inlined_call_operand.hbm [shape: f32[16,768], index: 0, kind: input, shape index: {}]
  %s1 = inlined_call_operand.hbm [shape: f32[1,768], index: 1, kind: input, shape index: {}]
  %s2 = inlined_call_operand.vmem [shape: f32[1,768], index: 2, kind: input, shape index: {}]
  %s3 = inlined_call_operand.hbm [shape: f32[16,768], index: 3, kind: output, shape index: {}]
  %s4 = sld [smem:[#allocation0]]
  $region30: #{tpu_custom_call.1} parent=0
    _
  %s6 = ssub.s32 1, %s4
  %s7 = scalar_select 0, %s6, %s4
  $region1: #{tpu_custom_call.1} parent=0
    #allocation2 [shape = 'u8[49152]{0}', space=vmem, size = 0xc000, scoped, tag = 'input window, operand 0, single buffered']
    #allocation3 [shape = 's32[1]{0}', space=sflag, size = 0x4, scoped, tag = 'scoped memory for tpu_custom_call.1']
    #allocation4 [shape = 's32[1]{0}', space=sflag, size = 0x4, scoped, tag = 'scoped memory for tpu_custom_call.1']
    #allocation5 [shape = 'u8[3072]{0}', space=vmem, size = 0xc00, scoped, tag = 'input window, operand 1, single buffered']
    #allocation6 [shape = 's32[1]{0}', space=sflag, size = 0x4, scoped, tag = 'scoped memory for tpu_custom_call.1']
    #allocation7 [shape = 'u8[49152]{0}', space=vmem, size = 0xc000, scoped, tag = 'output window, operand 0, single buffered']
    %8 = vsyncpa [#allocation3], 0
    %9 = vsyncpa [#allocation6], 0
    %10 = vsyncpa [#allocation4], 0
    // Predicated region
    $region2: #{tpu_custom_call.1} parent=1 // pred_check
      _
    $region3: #{tpu_custom_call.1} parent=1 // pred_check_branch
      %12 = sbr.rel (0) target = $region5
    $region4: #{tpu_custom_call.1} parent=1 // pred_region
      %s14 = ssub.s32 1536, 1536
      %15 = vsyncadd [#allocation3], %s14
      %s16 = sshll.u32 [#allocation2], 4
      %s17 = int_to_ptr.vmem [resolvable:$true] %s16
      %22 = dma.hbm_to_vmem [thread:$0]  %s0, 1536, %s17, [#allocation3], 768, 768, 48
    $region5: #{tpu_custom_call.1} parent=1 // pred_fallthru
      _
    // Predicated region
    $region6: #{tpu_custom_call.1} parent=1 // pred_check
      _
    $region7: #{tpu_custom_call.1} parent=1 // pred_check_branch
      %24 = sbr.rel (0) target = $region9
    $region8: #{tpu_custom_call.1} parent=1 // pred_region
      %s26 = ssub.s32 96, 96
      %27 = vsyncadd [#allocation6], %s26
      %s29 = sshll.u32 [#allocation5], 4
      %s30 = int_to_ptr.vmem [resolvable:$true] %s29
      %32 = dma.hbm_to_vmem [thread:$0]  %s1, 96, %s30, [#allocation6]
    $region9: #{tpu_custom_call.1} parent=1 // pred_fallthru
      _
    // Predicated region
    $region10: #{tpu_custom_call.1} parent=1 // pred_check
      _
    $region11: #{tpu_custom_call.1} parent=1 // pred_check_branch
      %34 = sbr.rel (0) target = $region13
    $region12: #{tpu_custom_call.1} parent=1 // pred_region
      _
    $region13: #{tpu_custom_call.1} parent=1 // pred_fallthru
      _
    // Predicated region
    $region14: #{tpu_custom_call.1} parent=1 // pred_check
      _
    $region15: #{tpu_custom_call.1} parent=1 // pred_check_branch
      %36 = sbr.rel (0) target = $region17
    $region16: #{tpu_custom_call.1} parent=1 // pred_region
      %37 = dma.done [#allocation3], 1536
    $region17: #{tpu_custom_call.1} parent=1 // pred_fallthru
      _
    // Predicated region
    $region18: #{tpu_custom_call.1} parent=1 // pred_check
      _
    $region19: #{tpu_custom_call.1} parent=1 // pred_check_branch
      %39 = sbr.rel (0) target = $region21
    $region20: #{tpu_custom_call.1} parent=1 // pred_region
      %40 = dma.done [#allocation6], 96
    $region21: #{tpu_custom_call.1} parent=1 // pred_fallthru
      _
    %v41 = vld [vmem:[#allocation2] sm:$0xff]
    %v42 = vld [vmem:[#allocation2 + $0x8] sm:$0xff]
    %v43 = vld [vmem:[#allocation2 + $0x10] sm:$0xff]
    %v44 = vld [vmem:[#allocation2 + $0x18] sm:$0xff]
    %v45 = vld [vmem:[#allocation2 + $0x20] sm:$0xff]
    %v46 = vld [vmem:[#allocation2 + $0x28] sm:$0xff]
    %v47 = vld [vmem:[#allocation2 + $0x30] sm:$0xff]
    %v48 = vld [vmem:[#allocation2 + $0x38] sm:$0xff]
    %v49 = vld [vmem:[#allocation2 + $0x40] sm:$0xff]
    %v50 = vld [vmem:[#allocation2 + $0x48] sm:$0xff]
    %v51 = vld [vmem:[#allocation2 + $0x50] sm:$0xff]
    %v52 = vld [vmem:[#allocation2 + $0x58] sm:$0xff]
    %v53 = vadd.f32 %v41, %v42
    %v54 = vadd.f32 %v53, %v43
    %v55 = vadd.f32 %v54, %v44
    %v56 = vadd.f32 %v55, %v45
    %v57 = vadd.f32 %v56, %v46
    %58 = vadd.xlane.f32.xlu0 %v57
    %v59 = vpop.xlane.xlu0 %58
    %v60 = vadd.f32 %v47, %v48
    %v61 = vadd.f32 %v60, %v49
    %v62 = vadd.f32 %v61, %v50
    %v63 = vadd.f32 %v62, %v51
    %v64 = vadd.f32 %v63, %v52
    %65 = vadd.xlane.f32.xlu0 %v64
    %v66 = vpop.xlane.xlu0 %65
    %v67 = vrcp.pop 768.0
    %v68 = vmul.f32 %v59, %v67
    %v69 = vmul.f32 %v66, %v67
    %v70 = vsub.f32 %v41, %v68
    %v71 = vsub.f32 %v42, %v68
    %v72 = vsub.f32 %v43, %v68
    %v73 = vsub.f32 %v44, %v68
    %v74 = vsub.f32 %v45, %v68
    %v75 = vsub.f32 %v46, %v68
    %v76 = vsub.f32 %v47, %v69
    %v77 = vsub.f32 %v48, %v69
    %v78 = vsub.f32 %v49, %v69
    %v79 = vsub.f32 %v50, %v69
    %v80 = vsub.f32 %v51, %v69
    %v81 = vsub.f32 %v52, %v69
    %v82 = vmul.f32 %v70, %v70
    %v83 = vmul.f32 %v71, %v71
    %v84 = vmul.f32 %v72, %v72
    %v85 = vmul.f32 %v73, %v73
    %v86 = vmul.f32 %v74, %v74
    %v87 = vmul.f32 %v75, %v75
    %v88 = vmul.f32 %v76, %v76
    %v89 = vmul.f32 %v77, %v77
    %v90 = vmul.f32 %v78, %v78
    %v91 = vmul.f32 %v79, %v79
    %v92 = vmul.f32 %v80, %v80
    %v93 = vmul.f32 %v81, %v81
    %v94 = vadd.f32 %v82, %v83
    %v95 = vadd.f32 %v94, %v84
    %v96 = vadd.f32 %v95, %v85
    %v97 = vadd.f32 %v96, %v86
    %v98 = vadd.f32 %v97, %v87
    %99 = vadd.xlane.f32.xlu0 %v98
    %v100 = vpop.xlane.xlu0 %99
    %v101 = vadd.f32 %v88, %v89
    %v102 = vadd.f32 %v101, %v90
    %v103 = vadd.f32 %v102, %v91
    %v104 = vadd.f32 %v103, %v92
    %v105 = vadd.f32 %v104, %v93
    %106 = vadd.xlane.f32.xlu0 %v105
    %v107 = vpop.xlane.xlu0 %106
    %v108 = vmul.f32 %v100, %v67
    %v109 = vmul.f32 %v107, %v67
    %v110 = vadd.f32 %v108, 1e-12
    %v111 = vadd.f32 %v109, 1e-12
    %v112 = vrsqrt.pop %v110
    %v113 = vrsqrt.pop %v111
    %v114 = vld [vmem:[#allocation5] sm:$0x3f]
    %v115 = vld [vmem:[%s2] sm:$0x3f]
    %v116 = vmul.f32 %v70, %v112
    %v117 = vmul.f32 %v71, %v112
    %v118 = vmul.f32 %v72, %v112
    %v119 = vmul.f32 %v73, %v112
    %v120 = vmul.f32 %v74, %v112
    %v121 = vmul.f32 %v75, %v112
    %v122 = vmul.f32 %v76, %v113
    %v123 = vmul.f32 %v77, %v113
    %v124 = vmul.f32 %v78, %v113
    %v125 = vmul.f32 %v79, %v113
    %v126 = vmul.f32 %v80, %v113
    %v127 = vmul.f32 %v81, %v113
    %v129 = vlaneseq
    %v130 = vshrl.u32 %v129, 7
    %v131 = vsub.s32 0, %v130
    %v132 = vrot.slane %v114, %v131
    %v133 = vlaneseq
    %v134 = vshrl.u32 %v133, 7
    %v135 = vsub.s32 1, %v134
    %v136 = vrot.slane %v114, %v135
    %v137 = vlaneseq
    %v138 = vshrl.u32 %v137, 7
    %v139 = vsub.s32 2, %v138
    %v140 = vrot.slane %v114, %v139
    %v141 = vlaneseq
    %v142 = vshrl.u32 %v141, 7
    %v143 = vsub.s32 3, %v142
    %v144 = vrot.slane %v114, %v143
    %v145 = vlaneseq
    %v146 = vshrl.u32 %v145, 7
    %v147 = vsub.s32 4, %v146
    %v148 = vrot.slane %v114, %v147
    %v149 = vlaneseq
    %v150 = vshrl.u32 %v149, 7
    %v151 = vsub.s32 5, %v150
    %v152 = vrot.slane %v114, %v151
    %v159 = vmul.f32 %v116, %v132
    %v160 = vmul.f32 %v117, %v136
    %v161 = vmul.f32 %v118, %v140
    %v162 = vmul.f32 %v119, %v144
    %v163 = vmul.f32 %v120, %v148
    %v164 = vmul.f32 %v121, %v152
    %v165 = vmul.f32 %v122, %v132
    %v166 = vmul.f32 %v123, %v136
    %v167 = vmul.f32 %v124, %v140
    %v168 = vmul.f32 %v125, %v144
    %v169 = vmul.f32 %v126, %v148
    %v170 = vmul.f32 %v127, %v152
    %v172 = vlaneseq
    %v173 = vshrl.u32 %v172, 7
    %v174 = vsub.s32 0, %v173
    %v175 = vrot.slane %v115, %v174
    %v176 = vlaneseq
    %v177 = vshrl.u32 %v176, 7
    %v178 = vsub.s32 1, %v177
    %v179 = vrot.slane %v115, %v178
    %v180 = vlaneseq
    %v181 = vshrl.u32 %v180, 7
    %v182 = vsub.s32 2, %v181
    %v183 = vrot.slane %v115, %v182
    %v184 = vlaneseq
    %v185 = vshrl.u32 %v184, 7
    %v186 = vsub.s32 3, %v185
    %v187 = vrot.slane %v115, %v186
    %v188 = vlaneseq
    %v189 = vshrl.u32 %v188, 7
    %v190 = vsub.s32 4, %v189
    %v191 = vrot.slane %v115, %v190
    %v192 = vlaneseq
    %v193 = vshrl.u32 %v192, 7
    %v194 = vsub.s32 5, %v193
    %v195 = vrot.slane %v115, %v194
    %v202 = vadd.f32 %v159, %v175
    %v203 = vadd.f32 %v160, %v179
    %v204 = vadd.f32 %v161, %v183
    %v205 = vadd.f32 %v162, %v187
    %v206 = vadd.f32 %v163, %v191
    %v207 = vadd.f32 %v164, %v195
    %v208 = vadd.f32 %v165, %v175
    %v209 = vadd.f32 %v166, %v179
    %v210 = vadd.f32 %v167, %v183
    %v211 = vadd.f32 %v168, %v187
    %v212 = vadd.f32 %v169, %v191
    %v213 = vadd.f32 %v170, %v195
    %214 = vst [vmem:[#allocation7] sm:$0xff] %v202
    %215 = vst [vmem:[#allocation7 + $0x8] sm:$0xff] %v203
    %216 = vst [vmem:[#allocation7 + $0x10] sm:$0xff] %v204
    %217 = vst [vmem:[#allocation7 + $0x18] sm:$0xff] %v205
    %218 = vst [vmem:[#allocation7 + $0x20] sm:$0xff] %v206
    %219 = vst [vmem:[#allocation7 + $0x28] sm:$0xff] %v207
    %220 = vst [vmem:[#allocation7 + $0x30] sm:$0xff] %v208
    %221 = vst [vmem:[#allocation7 + $0x38] sm:$0xff] %v209
    %222 = vst [vmem:[#allocation7 + $0x40] sm:$0xff] %v210
    %223 = vst [vmem:[#allocation7 + $0x48] sm:$0xff] %v211
    %224 = vst [vmem:[#allocation7 + $0x50] sm:$0xff] %v212
    %225 = vst [vmem:[#allocation7 + $0x58] sm:$0xff] %v213
    // Predicated region
    $region22: #{tpu_custom_call.1} parent=1 // pred_check
      _
    $region23: #{tpu_custom_call.1} parent=1 // pred_check_branch
      %227 = sbr.rel (0) target = $region25
    $region24: #{tpu_custom_call.1} parent=1 // pred_region
      %s229 = ssub.s32 1536, 1536
      %230 = vsyncadd [#allocation4], %s229
      %s231 = sshll.u32 [#allocation7], 4
      %s232 = int_to_ptr.vmem [resolvable:$true] %s231
      %237 = dma.vmem_to_hbm [thread:$0]  %s232, 1536, %s3, [#allocation4], 768, 768, 48
    $region25: #{tpu_custom_call.1} parent=1 // pred_fallthru
      _
    // Predicated region
    $region26: #{tpu_custom_call.1} parent=1 // pred_check
      _
    $region27: #{tpu_custom_call.1} parent=1 // pred_check_branch
      %239 = sbr.rel (0) target = $region29
    $region28: #{tpu_custom_call.1} parent=1 // pred_region
      %240 = dma.done [#allocation4], 1536
    $region29: #{tpu_custom_call.1} parent=1 // pred_fallthru
      _
    %241 = vsyncpa [#allocation3], 1
    %242 = vsyncpa [#allocation6], 1
    %243 = vsyncpa [#allocation4], 1

</llo_original>
